<compile_context>
chip_gen: v7x
topology: tpu7x:2x2x1
jax: 0.10.0
libtpu: 0.0.40
codegen_flags: <defaults>
</compile_context>

<pallas_src>
import jax
import jax.numpy as jnp
from jax import lax
from jax.experimental import pallas as pl
from jax.experimental.pallas import tpu as pltpu


def _lstm_tagger_kernel(x_ref, w_gates_t_ref, wout_t_ref, slab_ref, out_ref,
                        hall_ref):
    """Whole-sequence LSTM recurrence + deferred linear head, all in VMEM.

    x_ref:         (S, In)      input sequence (batch squeezed)
    w_gates_t_ref: (In+H, 4H)   [Wih^T ; Whh^T] fused row-wise
    wout_t_ref:    (H, C)       hidden2tag weight (pre-transposed)
    slab_ref:      (4, 4H)      packed small params: b | h0 | c0 | bout
    out_ref:       (S, C)       tag space output
    hall_ref:      (S, H)       scratch: all hidden states
    """
    S, In = x_ref.shape
    H = hall_ref.shape[1]
    C = out_ref.shape[1]

    # Unpack the lane-dense small-parameter slab (static slices, zero cost).
    b = slab_ref[0:1, :]                       # (1, 4H)  bias_ih + bias_hh
    h = slab_ref[1:2, 0:H]                     # (1, H)   h0
    c = slab_ref[2:3, 0:H]                     # (1, H)   c0
    bout = slab_ref[3:4, 0:C]                  # (1, C)

    # Static row-split of the fused gate weight.
    wih_t = w_gates_t_ref[0:In, :]             # (In, 4H)
    whh_t = w_gates_t_ref[In:In + H, :]        # (H, 4H)  hoisted into vregs

    # Batched input projection: one well-shaped MXU op, result stays in vregs.
    pre = (jnp.dot(x_ref[...], wih_t, preferred_element_type=jnp.float32)
           + b)                                # (S, 4H)

    # Lane mask selecting the tanh-activated g-gate lanes [2H, 3H).
    lane = lax.broadcasted_iota(jnp.int32, (1, 4 * H), 1)
    g_mask = (lane >= 2 * H) & (lane < 3 * H)
    g_scale = jnp.where(g_mask, 2.0, 1.0).astype(jnp.float32)   # hoisted

    # Fully unrolled serial recurrence.  PyTorch gate order: i, f, g, o.
    for t in range(S):
        gates = pre[t:t + 1, :] + jnp.dot(h, whh_t,
                                          preferred_element_type=jnp.float32)
        # ONE full-vreg EUP transcendental; tanh(x) = 2*sigmoid(2x) - 1 for g.
        s = jax.nn.sigmoid(gates * g_scale)
        act = jnp.where(g_mask, 2.0 * s - 1.0, s)      # VPU blend (free slot)
        i = act[:, 0 * H:1 * H]
        f = act[:, 1 * H:2 * H]
        g = act[:, 2 * H:3 * H]
        o = act[:, 3 * H:4 * H]
        c = f * c + i * g
        h = o * jnp.tanh(c)
        hall_ref[t:t + 1, :] = h

    # Deferred hidden2tag head: one matmul, one store.
    out_ref[...] = (jnp.dot(hall_ref[...], wout_t_ref[...],
                            preferred_element_type=jnp.float32)
                    + bout)                                      # (S, C)


def prepare_lstm_tagger_params(params):
    """One-time layout prep (hoisted out of the per-call hot path)."""
    in_size = params["wih"].shape[1]
    H = params["whh"].shape[1]
    C = params["wout"].shape[0]
    assert 4 * H >= max(H, C), "packed slab requires 4H >= H and 4H >= C"

    w_gates_t = jnp.concatenate(
        [params["wih"].T, params["whh"].T], axis=0).astype(jnp.float32)
    wout_t = params["wout"].T.astype(jnp.float32)                # (H, C)

    slab = jnp.zeros((4, 4 * H), jnp.float32)
    slab = slab.at[0, :].set((params["bih"] + params["bhh"]).reshape(4 * H))
    slab = slab.at[1, :H].set(params["h0"].reshape(H))
    slab = slab.at[2, :H].set(params["c0"].reshape(H))
    slab = slab.at[3, :C].set(params["bout"].reshape(C))

    return {"w_gates_t": w_gates_t, "wout_t": wout_t,
            "slab": slab, "in_size": jnp.int32(in_size)}


@jax.jit
def lstm_tagger(x, prepared):
    """x: (seq_len, 1, input_size) float32. Returns (seq_len, nb_classes)."""
    seq_len, batch, in_size = x.shape
    assert batch == 1, "module's fixed (1,1,H) h0/c0 implies batch == 1"
    w_gates_t = prepared["w_gates_t"]
    wout_t = prepared["wout_t"]
    slab = prepared["slab"]
    H, C = wout_t.shape

    x2d = x.reshape(seq_len, in_size).astype(jnp.float32)

    # Advisory cost hint so XLA schedules this tiny latency-bound call nicely.
    flops = (2 * seq_len * in_size * 4 * H       # x @ Wih^T
             + 2 * seq_len * H * 4 * H           # h @ Whh^T
             + 2 * seq_len * H * C               # hidden2tag
             + 10 * seq_len * H)                 # elementwise gate math
    transcendentals = seq_len * (4 * H + H)      # 1 sigmoid (4H) + 1 tanh (H)
    bytes_accessed = 4 * (seq_len * in_size + (in_size + H) * 4 * H
                          + 4 * 4 * H + H * C + seq_len * C)

    vmem = pl.BlockSpec(memory_space=pltpu.MemorySpace.VMEM)
    return pl.pallas_call(
        _lstm_tagger_kernel,
        out_shape=jax.ShapeDtypeStruct((seq_len, C), jnp.float32),
        in_specs=[vmem] * 4,
        out_specs=vmem,
        scratch_shapes=[pltpu.VMEM((seq_len, H), jnp.float32)],
        cost_estimate=pl.CostEstimate(flops=flops,
                                      transcendentals=transcendentals,
                                      bytes_accessed=bytes_accessed),
    )(x2d, w_gates_t, wout_t, slab)


def lstm_tagger_ref(x, params):
    """Pure-JAX reference mirroring torch.nn.LSTM + Linear semantics."""
    seq_len, _, _ = x.shape
    H = params["whh"].shape[1]
    wih, whh = params["wih"], params["whh"]
    b = params["bih"] + params["bhh"]
    h = params["h0"].reshape(1, H)
    c = params["c0"].reshape(1, H)
    outs = []
    for t in range(seq_len):
        x_t = x[t]                                            # (1, In)
        gates = x_t @ wih.T + h @ whh.T + b
        i = jax.nn.sigmoid(gates[:, 0 * H:1 * H])
        f = jax.nn.sigmoid(gates[:, 1 * H:2 * H])
        g = jnp.tanh(gates[:, 2 * H:3 * H])
        o = jax.nn.sigmoid(gates[:, 3 * H:4 * H])
        c = f * c + i * g
        h = o * jnp.tanh(c)
        outs.append(h)
    lstm_out = jnp.concatenate(outs, axis=0)                  # (S, H)
    return lstm_out @ params["wout"].T + params["bout"]


if __name__ == "__main__":
    input_size = 16
    hidden_size = 32
    num_layers = 1          # forced to 1 by the module's (1,1,H) h0/c0
    nb_classes = 8
    seq_len = 8

    key = jax.random.PRNGKey(0)
    ks = jax.random.split(key, 9)
    scale = 1.0 / jnp.sqrt(hidden_size)
    params = {
        "wih":  jax.random.uniform(ks[0], (4 * hidden_size, input_size),
                                   minval=-scale, maxval=scale, dtype=jnp.float32),
        "whh":  jax.random.uniform(ks[1], (4 * hidden_size, hidden_size),
                                   minval=-scale, maxval=scale, dtype=jnp.float32),
        "bih":  jax.random.uniform(ks[2], (4 * hidden_size,),
                                   minval=-scale, maxval=scale, dtype=jnp.float32),
        "bhh":  jax.random.uniform(ks[3], (4 * hidden_size,),
                                   minval=-scale, maxval=scale, dtype=jnp.float32),
        "wout": jax.random.uniform(ks[4], (nb_classes, hidden_size),
                                   minval=-scale, maxval=scale, dtype=jnp.float32),
        "bout": jax.random.uniform(ks[5], (nb_classes,),
                                   minval=-scale, maxval=scale, dtype=jnp.float32),
        "h0":   jax.random.normal(ks[6], (1, 1, hidden_size), dtype=jnp.float32),
        "c0":   jax.random.normal(ks[7], (1, 1, hidden_size), dtype=jnp.float32),
    }

    x = jax.random.normal(ks[8], (seq_len, 1, input_size), dtype=jnp.float32)

    prepared = prepare_lstm_tagger_params(params)   # one-time layout prep
    prepared = jax.tree_util.tree_map(jax.block_until_ready, prepared)

    out = lstm_tagger(x, prepared)
    out = jax.block_until_ready(out)

    ref = lstm_tagger_ref(x, params)
    assert out.shape == (seq_len, nb_classes)
    assert jnp.allclose(out, ref, rtol=1e-4, atol=1e-4), "mismatch vs reference"

    print("KERNEL_OK")
</pallas_src>

<mosaic_0001>
module attributes {stable_mosaic.version = 11 : i64} {
  func.func @_lstm_tagger_kernel(%arg0: memref<8x16xf32, #tpu.memory_space<vmem>>, %arg1: memref<48x128xf32, #tpu.memory_space<vmem>>, %arg2: memref<32x8xf32, #tpu.memory_space<vmem>>, %arg3: memref<4x128xf32, #tpu.memory_space<vmem>>, %arg4: memref<8x8xf32, #tpu.memory_space<vmem>>, %arg5: memref<8x32xf32, #tpu.memory_space<vmem>>) attributes {dimension_semantics = [], scalar_prefetch = 0 : i64, scratch_operands = 1 : i64, tpu.core_type = #tpu.core_type<tc>} {
    %c0 = arith.constant 0 : index
    %c0_0 = arith.constant 0 : index
    %0 = vector.load %arg3[%c0, %c0_0] : memref<4x128xf32, #tpu.memory_space<vmem>>, vector<1x128xf32>
    %c1 = arith.constant 1 : index
    %c0_1 = arith.constant 0 : index
    %1 = vector.load %arg3[%c1, %c0_1] : memref<4x128xf32, #tpu.memory_space<vmem>>, vector<1x32xf32>
    %c2 = arith.constant 2 : index
    %c0_2 = arith.constant 0 : index
    %2 = vector.load %arg3[%c2, %c0_2] : memref<4x128xf32, #tpu.memory_space<vmem>>, vector<1x32xf32>
    %c3 = arith.constant 3 : index
    %c0_3 = arith.constant 0 : index
    %3 = vector.load %arg3[%c3, %c0_3] : memref<4x128xf32, #tpu.memory_space<vmem>>, vector<1x8xf32>
    %c0_4 = arith.constant 0 : index
    %c0_5 = arith.constant 0 : index
    %4 = vector.load %arg1[%c0_4, %c0_5] : memref<48x128xf32, #tpu.memory_space<vmem>>, vector<16x128xf32>
    %c16 = arith.constant 16 : index
    %c0_6 = arith.constant 0 : index
    %5 = vector.load %arg1[%c16, %c0_6] : memref<48x128xf32, #tpu.memory_space<vmem>>, vector<32x128xf32>
    %c0_7 = arith.constant 0 : index
    %c0_8 = arith.constant 0 : index
    %6 = vector.load %arg0[%c0_7, %c0_8] : memref<8x16xf32, #tpu.memory_space<vmem>>, vector<8x16xf32>
    %cst = arith.constant dense<0.000000e+00> : vector<8x128xf32>
    %7 = tpu.matmul %6, %4, %cst {dimension_numbers = #tpu.dot_dimension_numbers<[1], [0], [0], [1], [0, 0, 1, 1], [], []>} : vector<8x16xf32>, vector<16x128xf32>, vector<8x128xf32> -> vector<8x128xf32>
    %8 = vector.broadcast %0 : vector<1x128xf32> to vector<8x128xf32>
    %9 = arith.addf %7, %8 : vector<8x128xf32>
    %10 = tpu.iota {dimensions = array<i32: 1>} : vector<1x128xi32>
    %c64_i32 = arith.constant 64 : i32
    %11 = vector.broadcast %c64_i32 : i32 to vector<1x128xi32>
    %12 = arith.cmpi sge, %10, %11 : vector<1x128xi32>
    %c96_i32 = arith.constant 96 : i32
    %13 = vector.broadcast %c96_i32 : i32 to vector<1x128xi32>
    %14 = arith.cmpi slt, %10, %13 : vector<1x128xi32>
    %15 = arith.andi %12, %14 : vector<1x128xi1>
    %cst_9 = arith.constant 2.000000e+00 : f32
    %cst_10 = arith.constant 1.000000e+00 : f32
    %16 = vector.broadcast %cst_9 : f32 to vector<1x128xf32>
    %17 = vector.broadcast %cst_10 : f32 to vector<1x128xf32>
    %18 = arith.select %15, %16, %17 : vector<1x128xi1>, vector<1x128xf32>
    %19 = vector.extract_strided_slice %9 {offsets = [0, 0], sizes = [1, 128], strides = [1, 1]} : vector<8x128xf32> to vector<1x128xf32>
    %cst_11 = arith.constant dense<0.000000e+00> : vector<1x128xf32>
    %20 = tpu.matmul %1, %5, %cst_11 {dimension_numbers = #tpu.dot_dimension_numbers<[1], [0], [0], [1], [0, 0, 1, 1], [], []>} : vector<1x32xf32>, vector<32x128xf32>, vector<1x128xf32> -> vector<1x128xf32>
    %21 = arith.addf %19, %20 : vector<1x128xf32>
    %22 = arith.mulf %21, %18 : vector<1x128xf32>
    %23 = arith.negf %22 : vector<1x128xf32>
    %24 = math.exp %23 : vector<1x128xf32>
    %cst_12 = arith.constant 1.000000e+00 : f32
    %25 = vector.broadcast %cst_12 : f32 to vector<1x128xf32>
    %26 = arith.addf %25, %24 : vector<1x128xf32>
    %27 = arith.divf %25, %26 : vector<1x128xf32>
    %cst_13 = arith.constant 2.000000e+00 : f32
    %28 = vector.broadcast %cst_13 : f32 to vector<1x128xf32>
    %29 = arith.mulf %28, %27 : vector<1x128xf32>
    %cst_14 = arith.constant 1.000000e+00 : f32
    %30 = vector.broadcast %cst_14 : f32 to vector<1x128xf32>
    %31 = arith.subf %29, %30 : vector<1x128xf32>
    %32 = arith.select %15, %31, %27 : vector<1x128xi1>, vector<1x128xf32>
    %33 = vector.extract_strided_slice %32 {offsets = [0, 0], sizes = [1, 32], strides = [1, 1]} : vector<1x128xf32> to vector<1x32xf32>
    %34 = vector.extract_strided_slice %32 {offsets = [0, 32], sizes = [1, 32], strides = [1, 1]} : vector<1x128xf32> to vector<1x32xf32>
    %35 = vector.extract_strided_slice %32 {offsets = [0, 64], sizes = [1, 32], strides = [1, 1]} : vector<1x128xf32> to vector<1x32xf32>
    %36 = vector.extract_strided_slice %32 {offsets = [0, 96], sizes = [1, 32], strides = [1, 1]} : vector<1x128xf32> to vector<1x32xf32>
    %37 = arith.mulf %34, %2 : vector<1x32xf32>
    %38 = arith.mulf %33, %35 : vector<1x32xf32>
    %39 = arith.addf %37, %38 : vector<1x32xf32>
    %40 = math.tanh %39 : vector<1x32xf32>
    %41 = arith.mulf %36, %40 : vector<1x32xf32>
    %c0_15 = arith.constant 0 : index
    %c0_16 = arith.constant 0 : index
    %42 = vector.load %arg5[%c0_15, %c0_16] : memref<8x32xf32, #tpu.memory_space<vmem>>, vector<1x32xf32>
    tpu.vector_store %arg5[%c0_15, %c0_16], %41 {strides = array<i32>} : memref<8x32xf32, #tpu.memory_space<vmem>>, vector<1x32xf32>,
    %43 = vector.extract_strided_slice %9 {offsets = [1, 0], sizes = [1, 128], strides = [1, 1]} : vector<8x128xf32> to vector<1x128xf32>
    %cst_17 = arith.constant dense<0.000000e+00> : vector<1x128xf32>
    %44 = tpu.matmul %41, %5, %cst_17 {dimension_numbers = #tpu.dot_dimension_numbers<[1], [0], [0], [1], [0, 0, 1, 1], [], []>} : vector<1x32xf32>, vector<32x128xf32>, vector<1x128xf32> -> vector<1x128xf32>
    %45 = arith.addf %43, %44 : vector<1x128xf32>
    %46 = arith.mulf %45, %18 : vector<1x128xf32>
    %47 = arith.negf %46 : vector<1x128xf32>
    %48 = math.exp %47 : vector<1x128xf32>
    %cst_18 = arith.constant 1.000000e+00 : f32
    %49 = vector.broadcast %cst_18 : f32 to vector<1x128xf32>
    %50 = arith.addf %49, %48 : vector<1x128xf32>
    %51 = arith.divf %49, %50 : vector<1x128xf32>
    %cst_19 = arith.constant 2.000000e+00 : f32
    %52 = vector.broadcast %cst_19 : f32 to vector<1x128xf32>
    %53 = arith.mulf %52, %51 : vector<1x128xf32>
    %cst_20 = arith.constant 1.000000e+00 : f32
    %54 = vector.broadcast %cst_20 : f32 to vector<1x128xf32>
    %55 = arith.subf %53, %54 : vector<1x128xf32>
    %56 = arith.select %15, %55, %51 : vector<1x128xi1>, vector<1x128xf32>
    %57 = vector.extract_strided_slice %56 {offsets = [0, 0], sizes = [1, 32], strides = [1, 1]} : vector<1x128xf32> to vector<1x32xf32>
    %58 = vector.extract_strided_slice %56 {offsets = [0, 32], sizes = [1, 32], strides = [1, 1]} : vector<1x128xf32> to vector<1x32xf32>
    %59 = vector.extract_strided_slice %56 {offsets = [0, 64], sizes = [1, 32], strides = [1, 1]} : vector<1x128xf32> to vector<1x32xf32>
    %60 = vector.extract_strided_slice %56 {offsets = [0, 96], sizes = [1, 32], strides = [1, 1]} : vector<1x128xf32> to vector<1x32xf32>
    %61 = arith.mulf %58, %39 : vector<1x32xf32>
    %62 = arith.mulf %57, %59 : vector<1x32xf32>
    %63 = arith.addf %61, %62 : vector<1x32xf32>
    %64 = math.tanh %63 : vector<1x32xf32>
    %65 = arith.mulf %60, %64 : vector<1x32xf32>
    %c1_21 = arith.constant 1 : index
    %c0_22 = arith.constant 0 : index
    %66 = vector.load %arg5[%c1_21, %c0_22] : memref<8x32xf32, #tpu.memory_space<vmem>>, vector<1x32xf32>
    tpu.vector_store %arg5[%c1_21, %c0_22], %65 {strides = array<i32>} : memref<8x32xf32, #tpu.memory_space<vmem>>, vector<1x32xf32>,
    %67 = vector.extract_strided_slice %9 {offsets = [2, 0], sizes = [1, 128], strides = [1, 1]} : vector<8x128xf32> to vector<1x128xf32>
    %cst_23 = arith.constant dense<0.000000e+00> : vector<1x128xf32>
    %68 = tpu.matmul %65, %5, %cst_23 {dimension_numbers = #tpu.dot_dimension_numbers<[1], [0], [0], [1], [0, 0, 1, 1], [], []>} : vector<1x32xf32>, vector<32x128xf32>, vector<1x128xf32> -> vector<1x128xf32>
    %69 = arith.addf %67, %68 : vector<1x128xf32>
    %70 = arith.mulf %69, %18 : vector<1x128xf32>
    %71 = arith.negf %70 : vector<1x128xf32>
    %72 = math.exp %71 : vector<1x128xf32>
    %cst_24 = arith.constant 1.000000e+00 : f32
    %73 = vector.broadcast %cst_24 : f32 to vector<1x128xf32>
    %74 = arith.addf %73, %72 : vector<1x128xf32>
    %75 = arith.divf %73, %74 : vector<1x128xf32>
    %cst_25 = arith.constant 2.000000e+00 : f32
    %76 = vector.broadcast %cst_25 : f32 to vector<1x128xf32>
    %77 = arith.mulf %76, %75 : vector<1x128xf32>
    %cst_26 = arith.constant 1.000000e+00 : f32
    %78 = vector.broadcast %cst_26 : f32 to vector<1x128xf32>
    %79 = arith.subf %77, %78 : vector<1x128xf32>
    %80 = arith.select %15, %79, %75 : vector<1x128xi1>, vector<1x128xf32>
    %81 = vector.extract_strided_slice %80 {offsets = [0, 0], sizes = [1, 32], strides = [1, 1]} : vector<1x128xf32> to vector<1x32xf32>
    %82 = vector.extract_strided_slice %80 {offsets = [0, 32], sizes = [1, 32], strides = [1, 1]} : vector<1x128xf32> to vector<1x32xf32>
    %83 = vector.extract_strided_slice %80 {offsets = [0, 64], sizes = [1, 32], strides = [1, 1]} : vector<1x128xf32> to vector<1x32xf32>
    %84 = vector.extract_strided_slice %80 {offsets = [0, 96], sizes = [1, 32], strides = [1, 1]} : vector<1x128xf32> to vector<1x32xf32>
    %85 = arith.mulf %82, %63 : vector<1x32xf32>
    %86 = arith.mulf %81, %83 : vector<1x32xf32>
    %87 = arith.addf %85, %86 : vector<1x32xf32>
    %88 = math.tanh %87 : vector<1x32xf32>
    %89 = arith.mulf %84, %88 : vector<1x32xf32>
    %c2_27 = arith.constant 2 : index
    %c0_28 = arith.constant 0 : index
    %90 = vector.load %arg5[%c2_27, %c0_28] : memref<8x32xf32, #tpu.memory_space<vmem>>, vector<1x32xf32>
    tpu.vector_store %arg5[%c2_27, %c0_28], %89 {strides = array<i32>} : memref<8x32xf32, #tpu.memory_space<vmem>>, vector<1x32xf32>,
    %91 = vector.extract_strided_slice %9 {offsets = [3, 0], sizes = [1, 128], strides = [1, 1]} : vector<8x128xf32> to vector<1x128xf32>
    %cst_29 = arith.constant dense<0.000000e+00> : vector<1x128xf32>
    %92 = tpu.matmul %89, %5, %cst_29 {dimension_numbers = #tpu.dot_dimension_numbers<[1], [0], [0], [1], [0, 0, 1, 1], [], []>} : vector<1x32xf32>, vector<32x128xf32>, vector<1x128xf32> -> vector<1x128xf32>
    %93 = arith.addf %91, %92 : vector<1x128xf32>
    %94 = arith.mulf %93, %18 : vector<1x128xf32>
    %95 = arith.negf %94 : vector<1x128xf32>
    %96 = math.exp %95 : vector<1x128xf32>
    %cst_30 = arith.constant 1.000000e+00 : f32
    %97 = vector.broadcast %cst_30 : f32 to vector<1x128xf32>
    %98 = arith.addf %97, %96 : vector<1x128xf32>
    %99 = arith.divf %97, %98 : vector<1x128xf32>
    %cst_31 = arith.constant 2.000000e+00 : f32
    %100 = vector.broadcast %cst_31 : f32 to vector<1x128xf32>
    %101 = arith.mulf %100, %99 : vector<1x128xf32>
    %cst_32 = arith.constant 1.000000e+00 : f32
    %102 = vector.broadcast %cst_32 : f32 to vector<1x128xf32>
    %103 = arith.subf %101, %102 : vector<1x128xf32>
    %104 = arith.select %15, %103, %99 : vector<1x128xi1>, vector<1x128xf32>
    %105 = vector.extract_strided_slice %104 {offsets = [0, 0], sizes = [1, 32], strides = [1, 1]} : vector<1x128xf32> to vector<1x32xf32>
    %106 = vector.extract_strided_slice %104 {offsets = [0, 32], sizes = [1, 32], strides = [1, 1]} : vector<1x128xf32> to vector<1x32xf32>
    %107 = vector.extract_strided_slice %104 {offsets = [0, 64], sizes = [1, 32], strides = [1, 1]} : vector<1x128xf32> to vector<1x32xf32>
    %108 = vector.extract_strided_slice %104 {offsets = [0, 96], sizes = [1, 32], strides = [1, 1]} : vector<1x128xf32> to vector<1x32xf32>
    %109 = arith.mulf %106, %87 : vector<1x32xf32>
    %110 = arith.mulf %105, %107 : vector<1x32xf32>
    %111 = arith.addf %109, %110 : vector<1x32xf32>
    %112 = math.tanh %111 : vector<1x32xf32>
    %113 = arith.mulf %108, %112 : vector<1x32xf32>
    %c3_33 = arith.constant 3 : index
    %c0_34 = arith.constant 0 : index
    %114 = vector.load %arg5[%c3_33, %c0_34] : memref<8x32xf32, #tpu.memory_space<vmem>>, vector<1x32xf32>
    tpu.vector_store %arg5[%c3_33, %c0_34], %113 {strides = array<i32>} : memref<8x32xf32, #tpu.memory_space<vmem>>, vector<1x32xf32>,
    %115 = vector.extract_strided_slice %9 {offsets = [4, 0], sizes = [1, 128], strides = [1, 1]} : vector<8x128xf32> to vector<1x128xf32>
    %cst_35 = arith.constant dense<0.000000e+00> : vector<1x128xf32>
    %116 = tpu.matmul %113, %5, %cst_35 {dimension_numbers = #tpu.dot_dimension_numbers<[1], [0], [0], [1], [0, 0, 1, 1], [], []>} : vector<1x32xf32>, vector<32x128xf32>, vector<1x128xf32> -> vector<1x128xf32>
    %117 = arith.addf %115, %116 : vector<1x128xf32>
    %118 = arith.mulf %117, %18 : vector<1x128xf32>
    %119 = arith.negf %118 : vector<1x128xf32>
    %120 = math.exp %119 : vector<1x128xf32>
    %cst_36 = arith.constant 1.000000e+00 : f32
    %121 = vector.broadcast %cst_36 : f32 to vector<1x128xf32>
    %122 = arith.addf %121, %120 : vector<1x128xf32>
    %123 = arith.divf %121, %122 : vector<1x128xf32>
    %cst_37 = arith.constant 2.000000e+00 : f32
    %124 = vector.broadcast %cst_37 : f32 to vector<1x128xf32>
    %125 = arith.mulf %124, %123 : vector<1x128xf32>
    %cst_38 = arith.constant 1.000000e+00 : f32
    %126 = vector.broadcast %cst_38 : f32 to vector<1x128xf32>
    %127 = arith.subf %125, %126 : vector<1x128xf32>
    %128 = arith.select %15, %127, %123 : vector<1x128xi1>, vector<1x128xf32>
    %129 = vector.extract_strided_slice %128 {offsets = [0, 0], sizes = [1, 32], strides = [1, 1]} : vector<1x128xf32> to vector<1x32xf32>
    %130 = vector.extract_strided_slice %128 {offsets = [0, 32], sizes = [1, 32], strides = [1, 1]} : vector<1x128xf32> to vector<1x32xf32>
    %131 = vector.extract_strided_slice %128 {offsets = [0, 64], sizes = [1, 32], strides = [1, 1]} : vector<1x128xf32> to vector<1x32xf32>
    %132 = vector.extract_strided_slice %128 {offsets = [0, 96], sizes = [1, 32], strides = [1, 1]} : vector<1x128xf32> to vector<1x32xf32>
    %133 = arith.mulf %130, %111 : vector<1x32xf32>
    %134 = arith.mulf %129, %131 : vector<1x32xf32>
    %135 = arith.addf %133, %134 : vector<1x32xf32>
    %136 = math.tanh %135 : vector<1x32xf32>
    %137 = arith.mulf %132, %136 : vector<1x32xf32>
    %c4 = arith.constant 4 : index
    %c0_39 = arith.constant 0 : index
    %138 = vector.load %arg5[%c4, %c0_39] : memref<8x32xf32, #tpu.memory_space<vmem>>, vector<1x32xf32>
    tpu.vector_store %arg5[%c4, %c0_39], %137 {strides = array<i32>} : memref<8x32xf32, #tpu.memory_space<vmem>>, vector<1x32xf32>,
    %139 = vector.extract_strided_slice %9 {offsets = [5, 0], sizes = [1, 128], strides = [1, 1]} : vector<8x128xf32> to vector<1x128xf32>
    %cst_40 = arith.constant dense<0.000000e+00> : vector<1x128xf32>
    %140 = tpu.matmul %137, %5, %cst_40 {dimension_numbers = #tpu.dot_dimension_numbers<[1], [0], [0], [1], [0, 0, 1, 1], [], []>} : vector<1x32xf32>, vector<32x128xf32>, vector<1x128xf32> -> vector<1x128xf32>
    %141 = arith.addf %139, %140 : vector<1x128xf32>
    %142 = arith.mulf %141, %18 : vector<1x128xf32>
    %143 = arith.negf %142 : vector<1x128xf32>
    %144 = math.exp %143 : vector<1x128xf32>
    %cst_41 = arith.constant 1.000000e+00 : f32
    %145 = vector.broadcast %cst_41 : f32 to vector<1x128xf32>
    %146 = arith.addf %145, %144 : vector<1x128xf32>
    %147 = arith.divf %145, %146 : vector<1x128xf32>
    %cst_42 = arith.constant 2.000000e+00 : f32
    %148 = vector.broadcast %cst_42 : f32 to vector<1x128xf32>
    %149 = arith.mulf %148, %147 : vector<1x128xf32>
    %cst_43 = arith.constant 1.000000e+00 : f32
    %150 = vector.broadcast %cst_43 : f32 to vector<1x128xf32>
    %151 = arith.subf %149, %150 : vector<1x128xf32>
    %152 = arith.select %15, %151, %147 : vector<1x128xi1>, vector<1x128xf32>
    %153 = vector.extract_strided_slice %152 {offsets = [0, 0], sizes = [1, 32], strides = [1, 1]} : vector<1x128xf32> to vector<1x32xf32>
    %154 = vector.extract_strided_slice %152 {offsets = [0, 32], sizes = [1, 32], strides = [1, 1]} : vector<1x128xf32> to vector<1x32xf32>
    %155 = vector.extract_strided_slice %152 {offsets = [0, 64], sizes = [1, 32], strides = [1, 1]} : vector<1x128xf32> to vector<1x32xf32>
    %156 = vector.extract_strided_slice %152 {offsets = [0, 96], sizes = [1, 32], strides = [1, 1]} : vector<1x128xf32> to vector<1x32xf32>
    %157 = arith.mulf %154, %135 : vector<1x32xf32>
    %158 = arith.mulf %153, %155 : vector<1x32xf32>
    %159 = arith.addf %157, %158 : vector<1x32xf32>
    %160 = math.tanh %159 : vector<1x32xf32>
    %161 = arith.mulf %156, %160 : vector<1x32xf32>
    %c5 = arith.constant 5 : index
    %c0_44 = arith.constant 0 : index
    %162 = vector.load %arg5[%c5, %c0_44] : memref<8x32xf32, #tpu.memory_space<vmem>>, vector<1x32xf32>
    tpu.vector_store %arg5[%c5, %c0_44], %161 {strides = array<i32>} : memref<8x32xf32, #tpu.memory_space<vmem>>, vector<1x32xf32>,
    %163 = vector.extract_strided_slice %9 {offsets = [6, 0], sizes = [1, 128], strides = [1, 1]} : vector<8x128xf32> to vector<1x128xf32>
    %cst_45 = arith.constant dense<0.000000e+00> : vector<1x128xf32>
    %164 = tpu.matmul %161, %5, %cst_45 {dimension_numbers = #tpu.dot_dimension_numbers<[1], [0], [0], [1], [0, 0, 1, 1], [], []>} : vector<1x32xf32>, vector<32x128xf32>, vector<1x128xf32> -> vector<1x128xf32>
    %165 = arith.addf %163, %164 : vector<1x128xf32>
    %166 = arith.mulf %165, %18 : vector<1x128xf32>
    %167 = arith.negf %166 : vector<1x128xf32>
    %168 = math.exp %167 : vector<1x128xf32>
    %cst_46 = arith.constant 1.000000e+00 : f32
    %169 = vector.broadcast %cst_46 : f32 to vector<1x128xf32>
    %170 = arith.addf %169, %168 : vector<1x128xf32>
    %171 = arith.divf %169, %170 : vector<1x128xf32>
    %cst_47 = arith.constant 2.000000e+00 : f32
    %172 = vector.broadcast %cst_47 : f32 to vector<1x128xf32>
    %173 = arith.mulf %172, %171 : vector<1x128xf32>
    %cst_48 = arith.constant 1.000000e+00 : f32
    %174 = vector.broadcast %cst_48 : f32 to vector<1x128xf32>
    %175 = arith.subf %173, %174 : vector<1x128xf32>
    %176 = arith.select %15, %175, %171 : vector<1x128xi1>, vector<1x128xf32>
    %177 = vector.extract_strided_slice %176 {offsets = [0, 0], sizes = [1, 32], strides = [1, 1]} : vector<1x128xf32> to vector<1x32xf32>
    %178 = vector.extract_strided_slice %176 {offsets = [0, 32], sizes = [1, 32], strides = [1, 1]} : vector<1x128xf32> to vector<1x32xf32>
    %179 = vector.extract_strided_slice %176 {offsets = [0, 64], sizes = [1, 32], strides = [1, 1]} : vector<1x128xf32> to vector<1x32xf32>
    %180 = vector.extract_strided_slice %176 {offsets = [0, 96], sizes = [1, 32], strides = [1, 1]} : vector<1x128xf32> to vector<1x32xf32>
    %181 = arith.mulf %178, %159 : vector<1x32xf32>
    %182 = arith.mulf %177, %179 : vector<1x32xf32>
    %183 = arith.addf %181, %182 : vector<1x32xf32>
    %184 = math.tanh %183 : vector<1x32xf32>
    %185 = arith.mulf %180, %184 : vector<1x32xf32>
    %c6 = arith.constant 6 : index
    %c0_49 = arith.constant 0 : index
    %186 = vector.load %arg5[%c6, %c0_49] : memref<8x32xf32, #tpu.memory_space<vmem>>, vector<1x32xf32>
    tpu.vector_store %arg5[%c6, %c0_49], %185 {strides = array<i32>} : memref<8x32xf32, #tpu.memory_space<vmem>>, vector<1x32xf32>,
    %187 = vector.extract_strided_slice %9 {offsets = [7, 0], sizes = [1, 128], strides = [1, 1]} : vector<8x128xf32> to vector<1x128xf32>
    %cst_50 = arith.constant dense<0.000000e+00> : vector<1x128xf32>
    %188 = tpu.matmul %185, %5, %cst_50 {dimension_numbers = #tpu.dot_dimension_numbers<[1], [0], [0], [1], [0, 0, 1, 1], [], []>} : vector<1x32xf32>, vector<32x128xf32>, vector<1x128xf32> -> vector<1x128xf32>
    %189 = arith.addf %187, %188 : vector<1x128xf32>
    %190 = arith.mulf %189, %18 : vector<1x128xf32>
    %191 = arith.negf %190 : vector<1x128xf32>
    %192 = math.exp %191 : vector<1x128xf32>
    %cst_51 = arith.constant 1.000000e+00 : f32
    %193 = vector.broadcast %cst_51 : f32 to vector<1x128xf32>
    %194 = arith.addf %193, %192 : vector<1x128xf32>
    %195 = arith.divf %193, %194 : vector<1x128xf32>
    %cst_52 = arith.constant 2.000000e+00 : f32
    %196 = vector.broadcast %cst_52 : f32 to vector<1x128xf32>
    %197 = arith.mulf %196, %195 : vector<1x128xf32>
    %cst_53 = arith.constant 1.000000e+00 : f32
    %198 = vector.broadcast %cst_53 : f32 to vector<1x128xf32>
    %199 = arith.subf %197, %198 : vector<1x128xf32>
    %200 = arith.select %15, %199, %195 : vector<1x128xi1>, vector<1x128xf32>
    %201 = vector.extract_strided_slice %200 {offsets = [0, 0], sizes = [1, 32], strides = [1, 1]} : vector<1x128xf32> to vector<1x32xf32>
    %202 = vector.extract_strided_slice %200 {offsets = [0, 32], sizes = [1, 32], strides = [1, 1]} : vector<1x128xf32> to vector<1x32xf32>
    %203 = vector.extract_strided_slice %200 {offsets = [0, 64], sizes = [1, 32], strides = [1, 1]} : vector<1x128xf32> to vector<1x32xf32>
    %204 = vector.extract_strided_slice %200 {offsets = [0, 96], sizes = [1, 32], strides = [1, 1]} : vector<1x128xf32> to vector<1x32xf32>
    %205 = arith.mulf %202, %183 : vector<1x32xf32>
    %206 = arith.mulf %201, %203 : vector<1x32xf32>
    %207 = arith.addf %205, %206 : vector<1x32xf32>
    %208 = math.tanh %207 : vector<1x32xf32>
    %209 = arith.mulf %204, %208 : vector<1x32xf32>
    %c7 = arith.constant 7 : index
    %c0_54 = arith.constant 0 : index
    %210 = vector.load %arg5[%c7, %c0_54] : memref<8x32xf32, #tpu.memory_space<vmem>>, vector<1x32xf32>
    tpu.vector_store %arg5[%c7, %c0_54], %209 {strides = array<i32>} : memref<8x32xf32, #tpu.memory_space<vmem>>, vector<1x32xf32>,
    %c0_55 = arith.constant 0 : index
    %c0_56 = arith.constant 0 : index
    %211 = vector.load %arg5[%c0_55, %c0_56] : memref<8x32xf32, #tpu.memory_space<vmem>>, vector<8x32xf32>
    %c0_57 = arith.constant 0 : index
    %c0_58 = arith.constant 0 : index
    %212 = vector.load %arg2[%c0_57, %c0_58] : memref<32x8xf32, #tpu.memory_space<vmem>>, vector<32x8xf32>
    %cst_59 = arith.constant dense<0.000000e+00> : vector<8x8xf32>
    %213 = tpu.matmul %211, %212, %cst_59 {dimension_numbers = #tpu.dot_dimension_numbers<[1], [0], [0], [1], [0, 0, 1, 1], [], []>} : vector<8x32xf32>, vector<32x8xf32>, vector<8x8xf32> -> vector<8x8xf32>
    %214 = vector.broadcast %3 : vector<1x8xf32> to vector<8x8xf32>
    %215 = arith.addf %213, %214 : vector<8x8xf32>
    %c0_60 = arith.constant 0 : index
    %c0_61 = arith.constant 0 : index
    %216 = vector.load %arg4[%c0_60, %c0_61] : memref<8x8xf32, #tpu.memory_space<vmem>>, vector<8x8xf32>
    tpu.vector_store %arg4[%c0_60, %c0_61], %215 {strides = array<i32>} : memref<8x8xf32, #tpu.memory_space<vmem>>, vector<8x8xf32>,
    return
  }
}

</mosaic_0001>

<llo_original>
// kernel: lstm_tagger.1
$region0: #{lstm_tagger.1}
  #allocation0 [shape = 'u32[]', space=smem, size = 0x4, offset = 0x4, fixed_abs, tag = 'smem constant byte address 0x4 - core index']
  #allocation1 [shape = 'u32[144,128]{1,0:T(1,128)}', space=vmem, size = 0x12000, scoped, tag = 'internal scratch']
  #allocation2 [shape = 'f32[8,32]{1,0:T(8,128)}', space=vmem, size = 0x1000, scoped, tag = 'scratch operand']
  %s0 = inlined_call_operand.hbm [shape: f32[8,16], index: 0, kind: input, shape index: {}]
  %s1 = inlined_call_operand.vmem [shape: f32[48,128], index: 1, kind: input, shape index: {}]
  %s2 = inlined_call_operand.vmem [shape: f32[32,8], index: 2, kind: input, shape index: {}]
  %s3 = inlined_call_operand.hbm [shape: f32[4,128], index: 3, kind: input, shape index: {}]
  %s4 = inlined_call_operand.hbm [shape: f32[8,8], index: 4, kind: output, shape index: {}]
  %s5 = sld [smem:[#allocation0]]
  $region34: #{lstm_tagger.1} parent=0
    _
  %s7 = ssub.s32 1, %s5
  %s8 = scalar_select 0, %s7, %s5
  $region1: #{lstm_tagger.1} parent=0
    #allocation3 [shape = 'u8[4096]{0}', space=vmem, size = 0x1000, scoped, tag = 'input window, operand 0, single buffered']
    #allocation4 [shape = 's32[1]{0}', space=sflag, size = 0x4, scoped, tag = 'scoped memory for lstm_tagger.1']
    #allocation5 [shape = 's32[1]{0}', space=sflag, size = 0x4, scoped, tag = 'scoped memory for lstm_tagger.1']
    #allocation6 [shape = 'u8[2048]{0}', space=vmem, size = 0x800, scoped, tag = 'input window, operand 3, single buffered']
    #allocation7 [shape = 's32[1]{0}', space=sflag, size = 0x4, scoped, tag = 'scoped memory for lstm_tagger.1']
    #allocation8 [shape = 'u8[4096]{0}', space=vmem, size = 0x1000, scoped, tag = 'output window, operand 0, single buffered']
    %9 = vsyncpa [#allocation4], 0
    %10 = vsyncpa [#allocation7], 0
    %11 = vsyncpa [#allocation5], 0
    // Predicated region
    $region2: #{lstm_tagger.1} parent=1 // pred_check
      _
    $region3: #{lstm_tagger.1} parent=1 // pred_check_branch
      %13 = sbr.rel (0) target = $region5
    $region4: #{lstm_tagger.1} parent=1 // pred_region
      %s15 = ssub.s32 128, 128
      %16 = vsyncadd [#allocation4], %s15
      %s18 = sshll.u32 [#allocation3], 4
      %s19 = int_to_ptr.vmem [resolvable:$true] %s18
      %21 = dma.hbm_to_vmem [thread:$0]  %s0, 128, %s19, [#allocation4]
    $region5: #{lstm_tagger.1} parent=1 // pred_fallthru
      _
    // Predicated region
    $region6: #{lstm_tagger.1} parent=1 // pred_check
      _
    $region7: #{lstm_tagger.1} parent=1 // pred_check_branch
      %23 = sbr.rel (0) target = $region9
    $region8: #{lstm_tagger.1} parent=1 // pred_region
      _
    $region9: #{lstm_tagger.1} parent=1 // pred_fallthru
      _
    // Predicated region
    $region10: #{lstm_tagger.1} parent=1 // pred_check
      _
    $region11: #{lstm_tagger.1} parent=1 // pred_check_branch
      %25 = sbr.rel (0) target = $region13
    $region12: #{lstm_tagger.1} parent=1 // pred_region
      _
    $region13: #{lstm_tagger.1} parent=1 // pred_fallthru
      _
    // Predicated region
    $region14: #{lstm_tagger.1} parent=1 // pred_check
      _
    $region15: #{lstm_tagger.1} parent=1 // pred_check_branch
      %27 = sbr.rel (0) target = $region17
    $region16: #{lstm_tagger.1} parent=1 // pred_region
      %s29 = ssub.s32 64, 64
      %30 = vsyncadd [#allocation7], %s29
      %s32 = sshll.u32 [#allocation6], 4
      %s33 = int_to_ptr.vmem [resolvable:$true] %s32
      %35 = dma.hbm_to_vmem [thread:$0]  %s3, 64, %s33, [#allocation7]
    $region17: #{lstm_tagger.1} parent=1 // pred_fallthru
      _
    // Predicated region
    $region18: #{lstm_tagger.1} parent=1 // pred_check
      _
    $region19: #{lstm_tagger.1} parent=1 // pred_check_branch
      %37 = sbr.rel (0) target = $region21
    $region20: #{lstm_tagger.1} parent=1 // pred_region
      %38 = dma.done [#allocation4], 128
    $region21: #{lstm_tagger.1} parent=1 // pred_fallthru
      _
    // Predicated region
    $region22: #{lstm_tagger.1} parent=1 // pred_check
      _
    $region23: #{lstm_tagger.1} parent=1 // pred_check_branch
      %40 = sbr.rel (0) target = $region25
    $region24: #{lstm_tagger.1} parent=1 // pred_region
      %41 = dma.done [#allocation7], 64
    $region25: #{lstm_tagger.1} parent=1 // pred_fallthru
      _
    %v42 = vld [vmem:[#allocation6] sm:$0x1]
    %v43 = vld [vmem:[#allocation6 + $0x1] sm:$0x1]
    %v44 = vld [vmem:[#allocation6 + $0x2] sm:$0x1]
    %v45 = vld [vmem:[#allocation6 + $0x3] sm:$0x1]
    %v46 = vld [vmem:[%s1] sm:$0xff]
    %v47 = vld [vmem:[%s1 + $0x8] sm:$0xff]
    %v48 = vld [vmem:[%s1 + $0x10] sm:$0xff]
    %v49 = vld [vmem:[%s1 + $0x18] sm:$0xff]
    %v50 = vld [vmem:[%s1 + $0x20] sm:$0xff]
    %v51 = vld [vmem:[%s1 + $0x28] sm:$0xff]
    %v52 = vld [vmem:[#allocation3] sm:$0xff]
    %v53 = vlaneseq
    %v54 = vshrl.u32 %v53, 7
    %v55 = vsub.s32 0, %v54
    %v56 = vrot.slane %v42, %v55
    %vm57 = vcmask 130048
    %v59 = vsel %vm57, %v52, 0
    %61 = vmatprep.subr.mxu0 0.0
    %62 = vmatpush1.msra.mxu0 %v46
    %63 = vmatprep.subr.mxu0 0.0
    %64 = vmatpush1.msra.mxu0 %v47
    %65 = vmatprep.subr.mxu0 0.0
    %66 = vmatpush1.msra.mxu0 0.0
    %67 = vmatprep.subr.mxu0 0.0
    %68 = vmatpush1.msra.mxu0 0.0
    %69 = vmatprep.subr.mxu0 0.0
    %70 = vmatpush1.msra.mxu0 0.0
    %71 = vmatprep.subr.mxu0 0.0
    %72 = vmatpush1.msra.mxu0 0.0
    %73 = vmatprep.subr.mxu0 0.0
    %74 = vmatpush1.msra.mxu0 0.0
    %75 = vmatprep.subr.mxu0 0.0
    %76 = vmatpush1.msra.mxu0 0.0
    %77 = vmatprep.subr.mxu0 0.0
    %78 = vmatpush1.msra.mxu0 0.0
    %79 = vmatprep.subr.mxu0 0.0
    %80 = vmatpush1.msra.mxu0 0.0
    %81 = vmatprep.subr.mxu0 0.0
    %82 = vmatpush1.msra.mxu0 0.0
    %83 = vmatprep.subr.mxu0 0.0
    %84 = vmatpush1.msra.mxu0 0.0
    %85 = vmatprep.subr.mxu0 0.0
    %86 = vmatpush1.msra.mxu0 0.0
    %87 = vmatprep.subr.mxu0 0.0
    %88 = vmatpush1.msra.mxu0 0.0
    %89 = vmatprep.subr.mxu0 0.0
    %90 = vmatpush1.msra.mxu0 0.0
    %91 = vmatprep.subr.mxu0 0.0
    %92 = vmatpush1.msra.mxu0 0.0
    %93 = vmatprep.subr.mxu0 0.0
    %94 = vmatpush1.msra.mxu0 0.0
    %95 = vmatprep.subr.mxu0 0.0
    %96 = vmatpush1.msra.mxu0 0.0
    %97 = vmatprep.subr.mxu0 0.0
    %98 = vmatpush1.msra.mxu0 0.0
    %99 = vmatprep.subr.mxu0 0.0
    %100 = vmatpush1.msra.mxu0 0.0
    %101 = vmatprep.subr.mxu0 0.0
    %102 = vmatpush1.msra.mxu0 0.0
    %103 = vmatprep.subr.mxu0 0.0
    %104 = vmatpush1.msra.mxu0 0.0
    %105 = vmatprep.subr.mxu0 0.0
    %106 = vmatpush1.msra.mxu0 0.0
    %107 = vmatprep.subr.mxu0 0.0
    %108 = vmatpush1.msra.mxu0 0.0
    %109 = vmatprep.subr.mxu0 0.0
    %110 = vmatpush1.msra.mxu0 0.0
    %111 = vmatprep.subr.mxu0 0.0
    %112 = vmatpush1.msra.mxu0 0.0
    %113 = vmatprep.subr.mxu0 0.0
    %114 = vmatpush1.msra.mxu0 0.0
    %115 = vmatprep.subr.mxu0 0.0
    %116 = vmatpush1.msra.mxu0 0.0
    %117 = vmatprep.subr.mxu0 0.0
    %118 = vmatpush1.msra.mxu0 0.0
    %119 = vmatprep.subr.mxu0 0.0
    %120 = vmatpush1.msra.mxu0 0.0
    %121 = vmatprep.subr.mxu0 0.0
    %122 = vmatpush1.msra.mxu0 0.0
    %123 = vmatprep.subr.mxu0 0.0
    %124 = vmatpush1.msra.mxu0 0.0
    %125 = vmatprep.mubr.f32.mxu0 0.0
    %126 = vmatmul.mubr.f32.gmra.mrb[0].mxu0 %v59
    %v127 = vpop.f32.mrb[0].mxu0
    %v128 = vadd.f32 %v56, %v127
    %v129 = vpop.f32.mrb[0].mxu0
    %130 = vdwg.mxu0
    %v131 = vlaneseq
    %v132 = vand.u32 %v131, 127
    %vm133 = vcmp.ge.s32.totalorder %v132, 64
    %vm134 = vcmp.lt.s32.totalorder %v132, 96
    %vm135 = vmand %vm133, %vm134
    %v136 = vsel %vm135, 2.0, 1.0
    %vm137 = vcmask 261120
    %v139 = vsel %vm137, %v43, 0
    %141 = vmatprep.subr.mxu0 0.0
    %142 = vmatpush1.msra.mxu0 %v48
    %143 = vmatprep.subr.mxu0 0.0
    %144 = vmatpush1.msra.mxu0 %v49
    %145 = vmatprep.subr.mxu0 0.0
    %146 = vmatpush1.msra.mxu0 %v50
    %147 = vmatprep.subr.mxu0 0.0
    %148 = vmatpush1.msra.mxu0 %v51
    %149 = vmatprep.subr.mxu0 0.0
    %150 = vmatpush1.msra.mxu0 0.0
    %151 = vmatprep.subr.mxu0 0.0
    %152 = vmatpush1.msra.mxu0 0.0
    %153 = vmatprep.subr.mxu0 0.0
    %154 = vmatpush1.msra.mxu0 0.0
    %155 = vmatprep.subr.mxu0 0.0
    %156 = vmatpush1.msra.mxu0 0.0
    %157 = vmatprep.subr.mxu0 0.0
    %158 = vmatpush1.msra.mxu0 0.0
    %159 = vmatprep.subr.mxu0 0.0
    %160 = vmatpush1.msra.mxu0 0.0
    %161 = vmatprep.subr.mxu0 0.0
    %162 = vmatpush1.msra.mxu0 0.0
    %163 = vmatprep.subr.mxu0 0.0
    %164 = vmatpush1.msra.mxu0 0.0
    %165 = vmatprep.subr.mxu0 0.0
    %166 = vmatpush1.msra.mxu0 0.0
    %167 = vmatprep.subr.mxu0 0.0
    %168 = vmatpush1.msra.mxu0 0.0
    %169 = vmatprep.subr.mxu0 0.0
    %170 = vmatpush1.msra.mxu0 0.0
    %171 = vmatprep.subr.mxu0 0.0
    %172 = vmatpush1.msra.mxu0 0.0
    %173 = vmatprep.subr.mxu0 0.0
    %174 = vmatpush1.msra.mxu0 0.0
    %175 = vmatprep.subr.mxu0 0.0
    %176 = vmatpush1.msra.mxu0 0.0
    %177 = vmatprep.subr.mxu0 0.0
    %178 = vmatpush1.msra.mxu0 0.0
    %179 = vmatprep.subr.mxu0 0.0
    %180 = vmatpush1.msra.mxu0 0.0
    %181 = vmatprep.subr.mxu0 0.0
    %182 = vmatpush1.msra.mxu0 0.0
    %183 = vmatprep.subr.mxu0 0.0
    %184 = vmatpush1.msra.mxu0 0.0
    %185 = vmatprep.subr.mxu0 0.0
    %186 = vmatpush1.msra.mxu0 0.0
    %187 = vmatprep.subr.mxu0 0.0
    %188 = vmatpush1.msra.mxu0 0.0
    %189 = vmatprep.subr.mxu0 0.0
    %190 = vmatpush1.msra.mxu0 0.0
    %191 = vmatprep.subr.mxu0 0.0
    %192 = vmatpush1.msra.mxu0 0.0
    %193 = vmatprep.subr.mxu0 0.0
    %194 = vmatpush1.msra.mxu0 0.0
    %195 = vmatprep.subr.mxu0 0.0
    %196 = vmatpush1.msra.mxu0 0.0
    %197 = vmatprep.subr.mxu0 0.0
    %198 = vmatpush1.msra.mxu0 0.0
    %199 = vmatprep.subr.mxu0 0.0
    %200 = vmatpush1.msra.mxu0 0.0
    %201 = vmatprep.subr.mxu0 0.0
    %202 = vmatpush1.msra.mxu0 0.0
    %203 = vmatprep.subr.mxu0 0.0
    %204 = vmatpush1.msra.mxu0 0.0
    %205 = vmatprep.mubr.f32.mxu0 0.0
    %206 = vmatmul.mubr.f32.gmra.mrb[0].mxu0 %v139
    %v207 = vpop.f32.mrb[0].mxu0
    %v208 = vadd.f32 0.0, %v207
    %v209 = vpop.f32.mrb[0].mxu0
    %210 = vdwg.mxu0
    %v211 = vadd.f32 %v128, %v208
    %v212 = vmul.f32 %v211, %v136
    %v213 = vxor.u32 %v212, 2147483648
    %v214 = vmul.f32 %v213, 1.442695
    %v215 = vpow.pop %v214
    %v216 = vadd.f32 %v215, 1.0
    %v217 = vrcp.pop %v216
    %v218 = vmul.f32 1.0, %v217
    %v219 = vmul.f32 %v218, 2.0
    %v220 = vsub.f32 %v219, 1.0
    %v221 = vsel %vm135, %v220, %v218
    %223 = vrot.lane.b32.xlu0 %v44, 32
    %v224 = vpop.permute.xlu0 %223
    %v226 = vmul.f32 %v221, %v224
    %228 = vrot.lane.b32.xlu0 %v221, 64
    %v229 = vpop.permute.xlu0 %228
    %v231 = vmul.f32 %v221, %v229
    %233 = vrot.lane.b32.xlu0 %v231, 32
    %v234 = vpop.permute.xlu0 %233
    %v236 = vadd.f32 %v226, %v234
    %v237 = vtanh.pop %v236
    %239 = vrot.lane.b32.xlu0 %v237, 64
    %v240 = vpop.permute.xlu0 %239
    %v242 = vmul.f32 %v221, %v240
    %244 = vrot.lane.b32.xlu0 %v242, 32
    %v245 = vpop.permute.xlu0 %244
    %vm247 = vcmask 253952
    %248 = vst.msk [vmem:[#allocation2] sm:$0x1] %vm247, %v245
    %v249 = vsel %vm137, %v245, 0
    %251 = vmatprep.subr.mxu0 0.0
    %252 = vmatpush1.msra.mxu0 %v48
    %253 = vmatprep.subr.mxu0 0.0
    %254 = vmatpush1.msra.mxu0 %v49
    %255 = vmatprep.subr.mxu0 0.0
    %256 = vmatpush1.msra.mxu0 %v50
    %257 = vmatprep.subr.mxu0 0.0
    %258 = vmatpush1.msra.mxu0 %v51
    %259 = vmatprep.subr.mxu0 0.0
    %260 = vmatpush1.msra.mxu0 0.0
    %261 = vmatprep.subr.mxu0 0.0
    %262 = vmatpush1.msra.mxu0 0.0
    %263 = vmatprep.subr.mxu0 0.0
    %264 = vmatpush1.msra.mxu0 0.0
    %265 = vmatprep.subr.mxu0 0.0
    %266 = vmatpush1.msra.mxu0 0.0
    %267 = vmatprep.subr.mxu0 0.0
    %268 = vmatpush1.msra.mxu0 0.0
    %269 = vmatprep.subr.mxu0 0.0
    %270 = vmatpush1.msra.mxu0 0.0
    %271 = vmatprep.subr.mxu0 0.0
    %272 = vmatpush1.msra.mxu0 0.0
    %273 = vmatprep.subr.mxu0 0.0
    %274 = vmatpush1.msra.mxu0 0.0
    %275 = vmatprep.subr.mxu0 0.0
    %276 = vmatpush1.msra.mxu0 0.0
    %277 = vmatprep.subr.mxu0 0.0
    %278 = vmatpush1.msra.mxu0 0.0
    %279 = vmatprep.subr.mxu0 0.0
    %280 = vmatpush1.msra.mxu0 0.0
    %281 = vmatprep.subr.mxu0 0.0
    %282 = vmatpush1.msra.mxu0 0.0
    %283 = vmatprep.subr.mxu0 0.0
    %284 = vmatpush1.msra.mxu0 0.0
    %285 = vmatprep.subr.mxu0 0.0
    %286 = vmatpush1.msra.mxu0 0.0
    %287 = vmatprep.subr.mxu0 0.0
    %288 = vmatpush1.msra.mxu0 0.0
    %289 = vmatprep.subr.mxu0 0.0
    %290 = vmatpush1.msra.mxu0 0.0
    %291 = vmatprep.subr.mxu0 0.0
    %292 = vmatpush1.msra.mxu0 0.0
    %293 = vmatprep.subr.mxu0 0.0
    %294 = vmatpush1.msra.mxu0 0.0
    %295 = vmatprep.subr.mxu0 0.0
    %296 = vmatpush1.msra.mxu0 0.0
    %297 = vmatprep.subr.mxu0 0.0
    %298 = vmatpush1.msra.mxu0 0.0
    %299 = vmatprep.subr.mxu0 0.0
    %300 = vmatpush1.msra.mxu0 0.0
    %301 = vmatprep.subr.mxu0 0.0
    %302 = vmatpush1.msra.mxu0 0.0
    %303 = vmatprep.subr.mxu0 0.0
    %304 = vmatpush1.msra.mxu0 0.0
    %305 = vmatprep.subr.mxu0 0.0
    %306 = vmatpush1.msra.mxu0 0.0
    %307 = vmatprep.subr.mxu0 0.0
    %308 = vmatpush1.msra.mxu0 0.0
    %309 = vmatprep.subr.mxu0 0.0
    %310 = vmatpush1.msra.mxu0 0.0
    %311 = vmatprep.subr.mxu0 0.0
    %312 = vmatpush1.msra.mxu0 0.0
    %313 = vmatprep.subr.mxu0 0.0
    %314 = vmatpush1.msra.mxu0 0.0
    %315 = vmatprep.mubr.f32.mxu0 0.0
    %316 = vmatmul.mubr.f32.gmra.mrb[0].mxu0 %v249
    %v317 = vpop.f32.mrb[0].mxu0
    %v318 = vadd.f32 0.0, %v317
    %v319 = vpop.f32.mrb[0].mxu0
    %320 = vdwg.mxu0
    %v322 = vrot.slane %v318, 7
    %v324 = vadd.f32 %v128, %v322
    %v325 = vmul.f32 %v324, %v136
    %v326 = vxor.u32 %v325, 2147483648
    %v327 = vmul.f32 %v326, 1.442695
    %v328 = vpow.pop %v327
    %v329 = vadd.f32 %v328, 1.0
    %v330 = vrcp.pop %v329
    %v331 = vmul.f32 1.0, %v330
    %v332 = vmul.f32 %v331, 2.0
    %v333 = vsub.f32 %v332, 1.0
    %v334 = vsel %vm135, %v333, %v331
    %v336 = vrot.slane %v236, 7
    %v338 = vmul.f32 %v334, %v336
    %340 = vrot.lane.b32.xlu0 %v334, 64
    %v341 = vpop.permute.xlu0 %340
    %v343 = vmul.f32 %v334, %v341
    %345 = vrot.lane.b32.xlu0 %v343, 32
    %v346 = vpop.permute.xlu0 %345
    %v348 = vadd.f32 %v338, %v346
    %v349 = vtanh.pop %v348
    %351 = vrot.lane.b32.xlu0 %v349, 64
    %v352 = vpop.permute.xlu0 %351
    %v354 = vmul.f32 %v334, %v352
    %356 = vrot.lane.b32.xlu0 %v354, 32
    %v357 = vpop.permute.xlu0 %356
    %vm359 = vcmask 254977
    %360 = vst.msk [vmem:[#allocation2] sm:$0x2] %vm359, %v357
    %v361 = vrot.slane %v354, 1
    %362 = vrot.lane.b32.xlu0 %v361, 32
    %v363 = vpop.permute.xlu0 %362
    %v364 = vsel %vm137, %v363, 0
    %366 = vmatprep.subr.mxu0 0.0
    %367 = vmatpush1.msra.mxu0 %v48
    %368 = vmatprep.subr.mxu0 0.0
    %369 = vmatpush1.msra.mxu0 %v49
    %370 = vmatprep.subr.mxu0 0.0
    %371 = vmatpush1.msra.mxu0 %v50
    %372 = vmatprep.subr.mxu0 0.0
    %373 = vmatpush1.msra.mxu0 %v51
    %374 = vmatprep.subr.mxu0 0.0
    %375 = vmatpush1.msra.mxu0 0.0
    %376 = vmatprep.subr.mxu0 0.0
    %377 = vmatpush1.msra.mxu0 0.0
    %378 = vmatprep.subr.mxu0 0.0
    %379 = vmatpush1.msra.mxu0 0.0
    %380 = vmatprep.subr.mxu0 0.0
    %381 = vmatpush1.msra.mxu0 0.0
    %382 = vmatprep.subr.mxu0 0.0
    %383 = vmatpush1.msra.mxu0 0.0
    %384 = vmatprep.subr.mxu0 0.0
    %385 = vmatpush1.msra.mxu0 0.0
    %386 = vmatprep.subr.mxu0 0.0
    %387 = vmatpush1.msra.mxu0 0.0
    %388 = vmatprep.subr.mxu0 0.0
    %389 = vmatpush1.msra.mxu0 0.0
    %390 = vmatprep.subr.mxu0 0.0
    %391 = vmatpush1.msra.mxu0 0.0
    %392 = vmatprep.subr.mxu0 0.0
    %393 = vmatpush1.msra.mxu0 0.0
    %394 = vmatprep.subr.mxu0 0.0
    %395 = vmatpush1.msra.mxu0 0.0
    %396 = vmatprep.subr.mxu0 0.0
    %397 = vmatpush1.msra.mxu0 0.0
    %398 = vmatprep.subr.mxu0 0.0
    %399 = vmatpush1.msra.mxu0 0.0
    %400 = vmatprep.subr.mxu0 0.0
    %401 = vmatpush1.msra.mxu0 0.0
    %402 = vmatprep.subr.mxu0 0.0
    %403 = vmatpush1.msra.mxu0 0.0
    %404 = vmatprep.subr.mxu0 0.0
    %405 = vmatpush1.msra.mxu0 0.0
    %406 = vmatprep.subr.mxu0 0.0
    %407 = vmatpush1.msra.mxu0 0.0
    %408 = vmatprep.subr.mxu0 0.0
    %409 = vmatpush1.msra.mxu0 0.0
    %410 = vmatprep.subr.mxu0 0.0
    %411 = vmatpush1.msra.mxu0 0.0
    %412 = vmatprep.subr.mxu0 0.0
    %413 = vmatpush1.msra.mxu0 0.0
    %414 = vmatprep.subr.mxu0 0.0
    %415 = vmatpush1.msra.mxu0 0.0
    %416 = vmatprep.subr.mxu0 0.0
    %417 = vmatpush1.msra.mxu0 0.0
    %418 = vmatprep.subr.mxu0 0.0
    %419 = vmatpush1.msra.mxu0 0.0
    %420 = vmatprep.subr.mxu0 0.0
    %421 = vmatpush1.msra.mxu0 0.0
    %422 = vmatprep.subr.mxu0 0.0
    %423 = vmatpush1.msra.mxu0 0.0
    %424 = vmatprep.subr.mxu0 0.0
    %425 = vmatpush1.msra.mxu0 0.0
    %426 = vmatprep.subr.mxu0 0.0
    %427 = vmatpush1.msra.mxu0 0.0
    %428 = vmatprep.subr.mxu0 0.0
    %429 = vmatpush1.msra.mxu0 0.0
    %430 = vmatprep.mubr.f32.mxu0 0.0
    %431 = vmatmul.mubr.f32.gmra.mrb[0].mxu0 %v364
    %v432 = vpop.f32.mrb[0].mxu0
    %v433 = vadd.f32 0.0, %v432
    %v434 = vpop.f32.mrb[0].mxu0
    %435 = vdwg.mxu0
    %v437 = vrot.slane %v433, 6
    %v439 = vadd.f32 %v128, %v437
    %v440 = vmul.f32 %v439, %v136
    %v441 = vxor.u32 %v440, 2147483648
    %v442 = vmul.f32 %v441, 1.442695
    %v443 = vpow.pop %v442
    %v444 = vadd.f32 %v443, 1.0
    %v445 = vrcp.pop %v444
    %v446 = vmul.f32 1.0, %v445
    %v447 = vmul.f32 %v446, 2.0
    %v448 = vsub.f32 %v447, 1.0
    %v449 = vsel %vm135, %v448, %v446
    %v451 = vrot.slane %v348, 7
    %v453 = vmul.f32 %v449, %v451
    %455 = vrot.lane.b32.xlu0 %v449, 64
    %v456 = vpop.permute.xlu0 %455
    %v458 = vmul.f32 %v449, %v456
    %460 = vrot.lane.b32.xlu0 %v458, 32
    %v461 = vpop.permute.xlu0 %460
    %v463 = vadd.f32 %v453, %v461
    %v464 = vtanh.pop %v463
    %466 = vrot.lane.b32.xlu0 %v464, 64
    %v467 = vpop.permute.xlu0 %466
    %v469 = vmul.f32 %v449, %v467
    %471 = vrot.lane.b32.xlu0 %v469, 32
    %v472 = vpop.permute.xlu0 %471
    %vm474 = vcmask 256002
    %475 = vst.msk [vmem:[#allocation2] sm:$0x4] %vm474, %v472
    %v476 = vrot.slane %v469, 2
    %477 = vrot.lane.b32.xlu0 %v476, 32
    %v478 = vpop.permute.xlu0 %477
    %v479 = vsel %vm137, %v478, 0
    %481 = vmatprep.subr.mxu0 0.0
    %482 = vmatpush1.msra.mxu0 %v48
    %483 = vmatprep.subr.mxu0 0.0
    %484 = vmatpush1.msra.mxu0 %v49
    %485 = vmatprep.subr.mxu0 0.0
    %486 = vmatpush1.msra.mxu0 %v50
    %487 = vmatprep.subr.mxu0 0.0
    %488 = vmatpush1.msra.mxu0 %v51
    %489 = vmatprep.subr.mxu0 0.0
    %490 = vmatpush1.msra.mxu0 0.0
    %491 = vmatprep.subr.mxu0 0.0
    %492 = vmatpush1.msra.mxu0 0.0
    %493 = vmatprep.subr.mxu0 0.0
    %494 = vmatpush1.msra.mxu0 0.0
    %495 = vmatprep.subr.mxu0 0.0
    %496 = vmatpush1.msra.mxu0 0.0
    %497 = vmatprep.subr.mxu0 0.0
    %498 = vmatpush1.msra.mxu0 0.0
    %499 = vmatprep.subr.mxu0 0.0
    %500 = vmatpush1.msra.mxu0 0.0
    %501 = vmatprep.subr.mxu0 0.0
    %502 = vmatpush1.msra.mxu0 0.0
    %503 = vmatprep.subr.mxu0 0.0
    %504 = vmatpush1.msra.mxu0 0.0
    %505 = vmatprep.subr.mxu0 0.0
    %506 = vmatpush1.msra.mxu0 0.0
    %507 = vmatprep.subr.mxu0 0.0
    %508 = vmatpush1.msra.mxu0 0.0
    %509 = vmatprep.subr.mxu0 0.0
    %510 = vmatpush1.msra.mxu0 0.0
    %511 = vmatprep.subr.mxu0 0.0
    %512 = vmatpush1.msra.mxu0 0.0
    %513 = vmatprep.subr.mxu0 0.0
    %514 = vmatpush1.msra.mxu0 0.0
    %515 = vmatprep.subr.mxu0 0.0
    %516 = vmatpush1.msra.mxu0 0.0
    %517 = vmatprep.subr.mxu0 0.0
    %518 = vmatpush1.msra.mxu0 0.0
    %519 = vmatprep.subr.mxu0 0.0
    %520 = vmatpush1.msra.mxu0 0.0
    %521 = vmatprep.subr.mxu0 0.0
    %522 = vmatpush1.msra.mxu0 0.0
    %523 = vmatprep.subr.mxu0 0.0
    %524 = vmatpush1.msra.mxu0 0.0
    %525 = vmatprep.subr.mxu0 0.0
    %526 = vmatpush1.msra.mxu0 0.0
    %527 = vmatprep.subr.mxu0 0.0
    %528 = vmatpush1.msra.mxu0 0.0
    %529 = vmatprep.subr.mxu0 0.0
    %530 = vmatpush1.msra.mxu0 0.0
    %531 = vmatprep.subr.mxu0 0.0
    %532 = vmatpush1.msra.mxu0 0.0
    %533 = vmatprep.subr.mxu0 0.0
    %534 = vmatpush1.msra.mxu0 0.0
    %535 = vmatprep.subr.mxu0 0.0
    %536 = vmatpush1.msra.mxu0 0.0
    %537 = vmatprep.subr.mxu0 0.0
    %538 = vmatpush1.msra.mxu0 0.0
    %539 = vmatprep.subr.mxu0 0.0
    %540 = vmatpush1.msra.mxu0 0.0
    %541 = vmatprep.subr.mxu0 0.0
    %542 = vmatpush1.msra.mxu0 0.0
    %543 = vmatprep.subr.mxu0 0.0
    %544 = vmatpush1.msra.mxu0 0.0
    %545 = vmatprep.mubr.f32.mxu0 0.0
    %546 = vmatmul.mubr.f32.gmra.mrb[0].mxu0 %v479
    %v547 = vpop.f32.mrb[0].mxu0
    %v548 = vadd.f32 0.0, %v547
    %v549 = vpop.f32.mrb[0].mxu0
    %550 = vdwg.mxu0
    %v552 = vrot.slane %v548, 5
    %v554 = vadd.f32 %v128, %v552
    %v555 = vmul.f32 %v554, %v136
    %v556 = vxor.u32 %v555, 2147483648
    %v557 = vmul.f32 %v556, 1.442695
    %v558 = vpow.pop %v557
    %v559 = vadd.f32 %v558, 1.0
    %v560 = vrcp.pop %v559
    %v561 = vmul.f32 1.0, %v560
    %v562 = vmul.f32 %v561, 2.0
    %v563 = vsub.f32 %v562, 1.0
    %v564 = vsel %vm135, %v563, %v561
    %v566 = vrot.slane %v463, 7
    %v568 = vmul.f32 %v564, %v566
    %570 = vrot.lane.b32.xlu0 %v564, 64
    %v571 = vpop.permute.xlu0 %570
    %v573 = vmul.f32 %v564, %v571
    %575 = vrot.lane.b32.xlu0 %v573, 32
    %v576 = vpop.permute.xlu0 %575
    %v578 = vadd.f32 %v568, %v576
    %v579 = vtanh.pop %v578
    %581 = vrot.lane.b32.xlu0 %v579, 64
    %v582 = vpop.permute.xlu0 %581
    %v584 = vmul.f32 %v564, %v582
    %586 = vrot.lane.b32.xlu0 %v584, 32
    %v587 = vpop.permute.xlu0 %586
    %vm589 = vcmask 257027
    %590 = vst.msk [vmem:[#allocation2] sm:$0x8] %vm589, %v587
    %v591 = vrot.slane %v584, 3
    %592 = vrot.lane.b32.xlu0 %v591, 32
    %v593 = vpop.permute.xlu0 %592
    %v594 = vsel %vm137, %v593, 0
    %596 = vmatprep.subr.mxu0 0.0
    %597 = vmatpush1.msra.mxu0 %v48
    %598 = vmatprep.subr.mxu0 0.0
    %599 = vmatpush1.msra.mxu0 %v49
    %600 = vmatprep.subr.mxu0 0.0
    %601 = vmatpush1.msra.mxu0 %v50
    %602 = vmatprep.subr.mxu0 0.0
    %603 = vmatpush1.msra.mxu0 %v51
    %604 = vmatprep.subr.mxu0 0.0
    %605 = vmatpush1.msra.mxu0 0.0
    %606 = vmatprep.subr.mxu0 0.0
    %607 = vmatpush1.msra.mxu0 0.0
    %608 = vmatprep.subr.mxu0 0.0
    %609 = vmatpush1.msra.mxu0 0.0
    %610 = vmatprep.subr.mxu0 0.0
    %611 = vmatpush1.msra.mxu0 0.0
    %612 = vmatprep.subr.mxu0 0.0
    %613 = vmatpush1.msra.mxu0 0.0
    %614 = vmatprep.subr.mxu0 0.0
    %615 = vmatpush1.msra.mxu0 0.0
    %616 = vmatprep.subr.mxu0 0.0
    %617 = vmatpush1.msra.mxu0 0.0
    %618 = vmatprep.subr.mxu0 0.0
    %619 = vmatpush1.msra.mxu0 0.0
    %620 = vmatprep.subr.mxu0 0.0
    %621 = vmatpush1.msra.mxu0 0.0
    %622 = vmatprep.subr.mxu0 0.0
    %623 = vmatpush1.msra.mxu0 0.0
    %624 = vmatprep.subr.mxu0 0.0
    %625 = vmatpush1.msra.mxu0 0.0
    %626 = vmatprep.subr.mxu0 0.0
    %627 = vmatpush1.msra.mxu0 0.0
    %628 = vmatprep.subr.mxu0 0.0
    %629 = vmatpush1.msra.mxu0 0.0
    %630 = vmatprep.subr.mxu0 0.0
    %631 = vmatpush1.msra.mxu0 0.0
    %632 = vmatprep.subr.mxu0 0.0
    %633 = vmatpush1.msra.mxu0 0.0
    %634 = vmatprep.subr.mxu0 0.0
    %635 = vmatpush1.msra.mxu0 0.0
    %636 = vmatprep.subr.mxu0 0.0
    %637 = vmatpush1.msra.mxu0 0.0
    %638 = vmatprep.subr.mxu0 0.0
    %639 = vmatpush1.msra.mxu0 0.0
    %640 = vmatprep.subr.mxu0 0.0
    %641 = vmatpush1.msra.mxu0 0.0
    %642 = vmatprep.subr.mxu0 0.0
    %643 = vmatpush1.msra.mxu0 0.0
    %644 = vmatprep.subr.mxu0 0.0
    %645 = vmatpush1.msra.mxu0 0.0
    %646 = vmatprep.subr.mxu0 0.0
    %647 = vmatpush1.msra.mxu0 0.0
    %648 = vmatprep.subr.mxu0 0.0
    %649 = vmatpush1.msra.mxu0 0.0
    %650 = vmatprep.subr.mxu0 0.0
    %651 = vmatpush1.msra.mxu0 0.0
    %652 = vmatprep.subr.mxu0 0.0
    %653 = vmatpush1.msra.mxu0 0.0
    %654 = vmatprep.subr.mxu0 0.0
    %655 = vmatpush1.msra.mxu0 0.0
    %656 = vmatprep.subr.mxu0 0.0
    %657 = vmatpush1.msra.mxu0 0.0
    %658 = vmatprep.subr.mxu0 0.0
    %659 = vmatpush1.msra.mxu0 0.0
    %660 = vmatprep.mubr.f32.mxu0 0.0
    %661 = vmatmul.mubr.f32.gmra.mrb[0].mxu0 %v594
    %v662 = vpop.f32.mrb[0].mxu0
    %v663 = vadd.f32 0.0, %v662
    %v664 = vpop.f32.mrb[0].mxu0
    %665 = vdwg.mxu0
    %v667 = vrot.slane %v663, 4
    %v669 = vadd.f32 %v128, %v667
    %v670 = vmul.f32 %v669, %v136
    %v671 = vxor.u32 %v670, 2147483648
    %v672 = vmul.f32 %v671, 1.442695
    %v673 = vpow.pop %v672
    %v674 = vadd.f32 %v673, 1.0
    %v675 = vrcp.pop %v674
    %v676 = vmul.f32 1.0, %v675
    %v677 = vmul.f32 %v676, 2.0
    %v678 = vsub.f32 %v677, 1.0
    %v679 = vsel %vm135, %v678, %v676
    %v681 = vrot.slane %v578, 7
    %v683 = vmul.f32 %v679, %v681
    %685 = vrot.lane.b32.xlu0 %v679, 64
    %v686 = vpop.permute.xlu0 %685
    %v688 = vmul.f32 %v679, %v686
    %690 = vrot.lane.b32.xlu0 %v688, 32
    %v691 = vpop.permute.xlu0 %690
    %v693 = vadd.f32 %v683, %v691
    %v694 = vtanh.pop %v693
    %696 = vrot.lane.b32.xlu0 %v694, 64
    %v697 = vpop.permute.xlu0 %696
    %v699 = vmul.f32 %v679, %v697
    %701 = vrot.lane.b32.xlu0 %v699, 32
    %v702 = vpop.permute.xlu0 %701
    %vm704 = vcmask 258052
    %705 = vst.msk [vmem:[#allocation2] sm:$0x10] %vm704, %v702
    %v706 = vrot.slane %v699, 4
    %707 = vrot.lane.b32.xlu0 %v706, 32
    %v708 = vpop.permute.xlu0 %707
    %v709 = vsel %vm137, %v708, 0
    %711 = vmatprep.subr.mxu0 0.0
    %712 = vmatpush1.msra.mxu0 %v48
    %713 = vmatprep.subr.mxu0 0.0
    %714 = vmatpush1.msra.mxu0 %v49
    %715 = vmatprep.subr.mxu0 0.0
    %716 = vmatpush1.msra.mxu0 %v50
    %717 = vmatprep.subr.mxu0 0.0
    %718 = vmatpush1.msra.mxu0 %v51
    %719 = vmatprep.subr.mxu0 0.0
    %720 = vmatpush1.msra.mxu0 0.0
    %721 = vmatprep.subr.mxu0 0.0
    %722 = vmatpush1.msra.mxu0 0.0
    %723 = vmatprep.subr.mxu0 0.0
    %724 = vmatpush1.msra.mxu0 0.0
    %725 = vmatprep.subr.mxu0 0.0
    %726 = vmatpush1.msra.mxu0 0.0
    %727 = vmatprep.subr.mxu0 0.0
    %728 = vmatpush1.msra.mxu0 0.0
    %729 = vmatprep.subr.mxu0 0.0
    %730 = vmatpush1.msra.mxu0 0.0
    %731 = vmatprep.subr.mxu0 0.0
    %732 = vmatpush1.msra.mxu0 0.0
    %733 = vmatprep.subr.mxu0 0.0
    %734 = vmatpush1.msra.mxu0 0.0
    %735 = vmatprep.subr.mxu0 0.0
    %736 = vmatpush1.msra.mxu0 0.0
    %737 = vmatprep.subr.mxu0 0.0
    %738 = vmatpush1.msra.mxu0 0.0
    %739 = vmatprep.subr.mxu0 0.0
    %740 = vmatpush1.msra.mxu0 0.0
    %741 = vmatprep.subr.mxu0 0.0
    %742 = vmatpush1.msra.mxu0 0.0
    %743 = vmatprep.subr.mxu0 0.0
    %744 = vmatpush1.msra.mxu0 0.0
    %745 = vmatprep.subr.mxu0 0.0
    %746 = vmatpush1.msra.mxu0 0.0
    %747 = vmatprep.subr.mxu0 0.0
    %748 = vmatpush1.msra.mxu0 0.0
    %749 = vmatprep.subr.mxu0 0.0
    %750 = vmatpush1.msra.mxu0 0.0
    %751 = vmatprep.subr.mxu0 0.0
    %752 = vmatpush1.msra.mxu0 0.0
    %753 = vmatprep.subr.mxu0 0.0
    %754 = vmatpush1.msra.mxu0 0.0
    %755 = vmatprep.subr.mxu0 0.0
    %756 = vmatpush1.msra.mxu0 0.0
    %757 = vmatprep.subr.mxu0 0.0
    %758 = vmatpush1.msra.mxu0 0.0
    %759 = vmatprep.subr.mxu0 0.0
    %760 = vmatpush1.msra.mxu0 0.0
    %761 = vmatprep.subr.mxu0 0.0
    %762 = vmatpush1.msra.mxu0 0.0
    %763 = vmatprep.subr.mxu0 0.0
    %764 = vmatpush1.msra.mxu0 0.0
    %765 = vmatprep.subr.mxu0 0.0
    %766 = vmatpush1.msra.mxu0 0.0
    %767 = vmatprep.subr.mxu0 0.0
    %768 = vmatpush1.msra.mxu0 0.0
    %769 = vmatprep.subr.mxu0 0.0
    %770 = vmatpush1.msra.mxu0 0.0
    %771 = vmatprep.subr.mxu0 0.0
    %772 = vmatpush1.msra.mxu0 0.0
    %773 = vmatprep.subr.mxu0 0.0
    %774 = vmatpush1.msra.mxu0 0.0
    %775 = vmatprep.mubr.f32.mxu0 0.0
    %776 = vmatmul.mubr.f32.gmra.mrb[0].mxu0 %v709
    %v777 = vpop.f32.mrb[0].mxu0
    %v778 = vadd.f32 0.0, %v777
    %v779 = vpop.f32.mrb[0].mxu0
    %780 = vdwg.mxu0
    %v782 = vrot.slane %v778, 3
    %v784 = vadd.f32 %v128, %v782
    %v785 = vmul.f32 %v784, %v136
    %v786 = vxor.u32 %v785, 2147483648
    %v787 = vmul.f32 %v786, 1.442695
    %v788 = vpow.pop %v787
    %v789 = vadd.f32 %v788, 1.0
    %v790 = vrcp.pop %v789
    %v791 = vmul.f32 1.0, %v790
    %v792 = vmul.f32 %v791, 2.0
    %v793 = vsub.f32 %v792, 1.0
    %v794 = vsel %vm135, %v793, %v791
    %v796 = vrot.slane %v693, 7
    %v798 = vmul.f32 %v794, %v796
    %800 = vrot.lane.b32.xlu0 %v794, 64
    %v801 = vpop.permute.xlu0 %800
    %v803 = vmul.f32 %v794, %v801
    %805 = vrot.lane.b32.xlu0 %v803, 32
    %v806 = vpop.permute.xlu0 %805
    %v808 = vadd.f32 %v798, %v806
    %v809 = vtanh.pop %v808
    %811 = vrot.lane.b32.xlu0 %v809, 64
    %v812 = vpop.permute.xlu0 %811
    %v814 = vmul.f32 %v794, %v812
    %816 = vrot.lane.b32.xlu0 %v814, 32
    %v817 = vpop.permute.xlu0 %816
    %vm819 = vcmask 259077
    %820 = vst.msk [vmem:[#allocation2] sm:$0x20] %vm819, %v817
    %v821 = vrot.slane %v814, 5
    %822 = vrot.lane.b32.xlu0 %v821, 32
    %v823 = vpop.permute.xlu0 %822
    %v824 = vsel %vm137, %v823, 0
    %826 = vmatprep.subr.mxu0 0.0
    %827 = vmatpush1.msra.mxu0 %v48
    %828 = vmatprep.subr.mxu0 0.0
    %829 = vmatpush1.msra.mxu0 %v49
    %830 = vmatprep.subr.mxu0 0.0
    %831 = vmatpush1.msra.mxu0 %v50
    %832 = vmatprep.subr.mxu0 0.0
    %833 = vmatpush1.msra.mxu0 %v51
    %834 = vmatprep.subr.mxu0 0.0
    %835 = vmatpush1.msra.mxu0 0.0
    %836 = vmatprep.subr.mxu0 0.0
    %837 = vmatpush1.msra.mxu0 0.0
    %838 = vmatprep.subr.mxu0 0.0
    %839 = vmatpush1.msra.mxu0 0.0
    %840 = vmatprep.subr.mxu0 0.0
    %841 = vmatpush1.msra.mxu0 0.0
    %842 = vmatprep.subr.mxu0 0.0
    %843 = vmatpush1.msra.mxu0 0.0
    %844 = vmatprep.subr.mxu0 0.0
    %845 = vmatpush1.msra.mxu0 0.0
    %846 = vmatprep.subr.mxu0 0.0
    %847 = vmatpush1.msra.mxu0 0.0
    %848 = vmatprep.subr.mxu0 0.0
    %849 = vmatpush1.msra.mxu0 0.0
    %850 = vmatprep.subr.mxu0 0.0
    %851 = vmatpush1.msra.mxu0 0.0
    %852 = vmatprep.subr.mxu0 0.0
    %853 = vmatpush1.msra.mxu0 0.0
    %854 = vmatprep.subr.mxu0 0.0
    %855 = vmatpush1.msra.mxu0 0.0
    %856 = vmatprep.subr.mxu0 0.0
    %857 = vmatpush1.msra.mxu0 0.0
    %858 = vmatprep.subr.mxu0 0.0
    %859 = vmatpush1.msra.mxu0 0.0
    %860 = vmatprep.subr.mxu0 0.0
    %861 = vmatpush1.msra.mxu0 0.0
    %862 = vmatprep.subr.mxu0 0.0
    %863 = vmatpush1.msra.mxu0 0.0
    %864 = vmatprep.subr.mxu0 0.0
    %865 = vmatpush1.msra.mxu0 0.0
    %866 = vmatprep.subr.mxu0 0.0
    %867 = vmatpush1.msra.mxu0 0.0
    %868 = vmatprep.subr.mxu0 0.0
    %869 = vmatpush1.msra.mxu0 0.0
    %870 = vmatprep.subr.mxu0 0.0
    %871 = vmatpush1.msra.mxu0 0.0
    %872 = vmatprep.subr.mxu0 0.0
    %873 = vmatpush1.msra.mxu0 0.0
    %874 = vmatprep.subr.mxu0 0.0
    %875 = vmatpush1.msra.mxu0 0.0
    %876 = vmatprep.subr.mxu0 0.0
    %877 = vmatpush1.msra.mxu0 0.0
    %878 = vmatprep.subr.mxu0 0.0
    %879 = vmatpush1.msra.mxu0 0.0
    %880 = vmatprep.subr.mxu0 0.0
    %881 = vmatpush1.msra.mxu0 0.0
    %882 = vmatprep.subr.mxu0 0.0
    %883 = vmatpush1.msra.mxu0 0.0
    %884 = vmatprep.subr.mxu0 0.0
    %885 = vmatpush1.msra.mxu0 0.0
    %886 = vmatprep.subr.mxu0 0.0
    %887 = vmatpush1.msra.mxu0 0.0
    %888 = vmatprep.subr.mxu0 0.0
    %889 = vmatpush1.msra.mxu0 0.0
    %890 = vmatprep.mubr.f32.mxu0 0.0
    %891 = vmatmul.mubr.f32.gmra.mrb[0].mxu0 %v824
    %v892 = vpop.f32.mrb[0].mxu0
    %v893 = vadd.f32 0.0, %v892
    %v894 = vpop.f32.mrb[0].mxu0
    %895 = vdwg.mxu0
    %v897 = vrot.slane %v893, 2
    %v899 = vadd.f32 %v128, %v897
    %v900 = vmul.f32 %v899, %v136
    %v901 = vxor.u32 %v900, 2147483648
    %v902 = vmul.f32 %v901, 1.442695
    %v903 = vpow.pop %v902
    %v904 = vadd.f32 %v903, 1.0
    %v905 = vrcp.pop %v904
    %v906 = vmul.f32 1.0, %v905
    %v907 = vmul.f32 %v906, 2.0
    %v908 = vsub.f32 %v907, 1.0
    %v909 = vsel %vm135, %v908, %v906
    %v911 = vrot.slane %v808, 7
    %v913 = vmul.f32 %v909, %v911
    %915 = vrot.lane.b32.xlu0 %v909, 64
    %v916 = vpop.permute.xlu0 %915
    %v918 = vmul.f32 %v909, %v916
    %920 = vrot.lane.b32.xlu0 %v918, 32
    %v921 = vpop.permute.xlu0 %920
    %v923 = vadd.f32 %v913, %v921
    %v924 = vtanh.pop %v923
    %926 = vrot.lane.b32.xlu0 %v924, 64
    %v927 = vpop.permute.xlu0 %926
    %v929 = vmul.f32 %v909, %v927
    %931 = vrot.lane.b32.xlu0 %v929, 32
    %v932 = vpop.permute.xlu0 %931
    %vm934 = vcmask 260102
    %935 = vst.msk [vmem:[#allocation2] sm:$0x40] %vm934, %v932
    %v936 = vrot.slane %v929, 6
    %937 = vrot.lane.b32.xlu0 %v936, 32
    %v938 = vpop.permute.xlu0 %937
    %v939 = vsel %vm137, %v938, 0
    %941 = vmatprep.subr.mxu0 0.0
    %942 = vmatpush1.msra.mxu0 %v48
    %943 = vmatprep.subr.mxu0 0.0
    %944 = vmatpush1.msra.mxu0 %v49
    %945 = vmatprep.subr.mxu0 0.0
    %946 = vmatpush1.msra.mxu0 %v50
    %947 = vmatprep.subr.mxu0 0.0
    %948 = vmatpush1.msra.mxu0 %v51
    %949 = vmatprep.subr.mxu0 0.0
    %950 = vmatpush1.msra.mxu0 0.0
    %951 = vmatprep.subr.mxu0 0.0
    %952 = vmatpush1.msra.mxu0 0.0
    %953 = vmatprep.subr.mxu0 0.0
    %954 = vmatpush1.msra.mxu0 0.0
    %955 = vmatprep.subr.mxu0 0.0
    %956 = vmatpush1.msra.mxu0 0.0
    %957 = vmatprep.subr.mxu0 0.0
    %958 = vmatpush1.msra.mxu0 0.0
    %959 = vmatprep.subr.mxu0 0.0
    %960 = vmatpush1.msra.mxu0 0.0
    %961 = vmatprep.subr.mxu0 0.0
    %962 = vmatpush1.msra.mxu0 0.0
    %963 = vmatprep.subr.mxu0 0.0
    %964 = vmatpush1.msra.mxu0 0.0
    %965 = vmatprep.subr.mxu0 0.0
    %966 = vmatpush1.msra.mxu0 0.0
    %967 = vmatprep.subr.mxu0 0.0
    %968 = vmatpush1.msra.mxu0 0.0
    %969 = vmatprep.subr.mxu0 0.0
    %970 = vmatpush1.msra.mxu0 0.0
    %971 = vmatprep.subr.mxu0 0.0
    %972 = vmatpush1.msra.mxu0 0.0
    %973 = vmatprep.subr.mxu0 0.0
    %974 = vmatpush1.msra.mxu0 0.0
    %975 = vmatprep.subr.mxu0 0.0
    %976 = vmatpush1.msra.mxu0 0.0
    %977 = vmatprep.subr.mxu0 0.0
    %978 = vmatpush1.msra.mxu0 0.0
    %979 = vmatprep.subr.mxu0 0.0
    %980 = vmatpush1.msra.mxu0 0.0
    %981 = vmatprep.subr.mxu0 0.0
    %982 = vmatpush1.msra.mxu0 0.0
    %983 = vmatprep.subr.mxu0 0.0
    %984 = vmatpush1.msra.mxu0 0.0
    %985 = vmatprep.subr.mxu0 0.0
    %986 = vmatpush1.msra.mxu0 0.0
    %987 = vmatprep.subr.mxu0 0.0
    %988 = vmatpush1.msra.mxu0 0.0
    %989 = vmatprep.subr.mxu0 0.0
    %990 = vmatpush1.msra.mxu0 0.0
    %991 = vmatprep.subr.mxu0 0.0
    %992 = vmatpush1.msra.mxu0 0.0
    %993 = vmatprep.subr.mxu0 0.0
    %994 = vmatpush1.msra.mxu0 0.0
    %995 = vmatprep.subr.mxu0 0.0
    %996 = vmatpush1.msra.mxu0 0.0
    %997 = vmatprep.subr.mxu0 0.0
    %998 = vmatpush1.msra.mxu0 0.0
    %999 = vmatprep.subr.mxu0 0.0
    %1000 = vmatpush1.msra.mxu0 0.0
    %1001 = vmatprep.subr.mxu0 0.0
    %1002 = vmatpush1.msra.mxu0 0.0
    %1003 = vmatprep.subr.mxu0 0.0
    %1004 = vmatpush1.msra.mxu0 0.0
    %1005 = vmatprep.mubr.f32.mxu0 0.0
    %1006 = vmatmul.mubr.f32.gmra.mrb[0].mxu0 %v939
    %v1007 = vpop.f32.mrb[0].mxu0
    %v1008 = vadd.f32 0.0, %v1007
    %v1009 = vpop.f32.mrb[0].mxu0
    %1010 = vdwg.mxu0
    %v1012 = vrot.slane %v1008, 1
    %v1014 = vadd.f32 %v128, %v1012
    %v1015 = vmul.f32 %v1014, %v136
    %v1016 = vxor.u32 %v1015, 2147483648
    %v1017 = vmul.f32 %v1016, 1.442695
    %v1018 = vpow.pop %v1017
    %v1019 = vadd.f32 %v1018, 1.0
    %v1020 = vrcp.pop %v1019
    %v1021 = vmul.f32 1.0, %v1020
    %v1022 = vmul.f32 %v1021, 2.0
    %v1023 = vsub.f32 %v1022, 1.0
    %v1024 = vsel %vm135, %v1023, %v1021
    %v1026 = vrot.slane %v923, 7
    %v1028 = vmul.f32 %v1024, %v1026
    %1030 = vrot.lane.b32.xlu0 %v1024, 64
    %v1031 = vpop.permute.xlu0 %1030
    %v1033 = vmul.f32 %v1024, %v1031
    %1035 = vrot.lane.b32.xlu0 %v1033, 32
    %v1036 = vpop.permute.xlu0 %1035
    %v1038 = vadd.f32 %v1028, %v1036
    %v1039 = vtanh.pop %v1038
    %1041 = vrot.lane.b32.xlu0 %v1039, 64
    %v1042 = vpop.permute.xlu0 %1041
    %v1044 = vmul.f32 %v1024, %v1042
    %1046 = vrot.lane.b32.xlu0 %v1044, 32
    %v1047 = vpop.permute.xlu0 %1046
    %vm1049 = vcmask 261127
    %1050 = vst.msk [vmem:[#allocation2] sm:$0x80] %vm1049, %v1047
    %v1051 = vld [vmem:[#allocation2] sm:$0xff]
    %v1052 = vld [vmem:[%s2] sm:$0xff]
    %v1053 = vld [vmem:[%s2 + $0x8] sm:$0xff]
    %v1054 = vld [vmem:[%s2 + $0x10] sm:$0xff]
    %v1055 = vld [vmem:[%s2 + $0x18] sm:$0xff]
    %v1056 = vlaneseq
    %v1057 = vshrl.u32 %v1056, 7
    %v1058 = vsub.s32 0, %v1057
    %v1059 = vrot.slane %v45, %v1058
    %v1061 = vsel %vm137, %v1051, 0
    %1063 = vmatprep.subr.mxu0 0.0
    %1064 = vmatpush1.msra.mxu0 %v1052
    %1065 = vmatprep.subr.mxu0 0.0
    %1066 = vmatpush1.msra.mxu0 %v1053
    %1067 = vmatprep.subr.mxu0 0.0
    %1068 = vmatpush1.msra.mxu0 %v1054
    %1069 = vmatprep.subr.mxu0 0.0
    %1070 = vmatpush1.msra.mxu0 %v1055
    %1071 = vmatprep.subr.mxu0 0.0
    %1072 = vmatpush1.msra.mxu0 0.0
    %1073 = vmatprep.subr.mxu0 0.0
    %1074 = vmatpush1.msra.mxu0 0.0
    %1075 = vmatprep.subr.mxu0 0.0
    %1076 = vmatpush1.msra.mxu0 0.0
    %1077 = vmatprep.subr.mxu0 0.0
    %1078 = vmatpush1.msra.mxu0 0.0
    %1079 = vmatprep.subr.mxu0 0.0
    %1080 = vmatpush1.msra.mxu0 0.0
    %1081 = vmatprep.subr.mxu0 0.0
    %1082 = vmatpush1.msra.mxu0 0.0
    %1083 = vmatprep.subr.mxu0 0.0
    %1084 = vmatpush1.msra.mxu0 0.0
    %1085 = vmatprep.subr.mxu0 0.0
    %1086 = vmatpush1.msra.mxu0 0.0
    %1087 = vmatprep.subr.mxu0 0.0
    %1088 = vmatpush1.msra.mxu0 0.0
    %1089 = vmatprep.subr.mxu0 0.0
    %1090 = vmatpush1.msra.mxu0 0.0
    %1091 = vmatprep.subr.mxu0 0.0
    %1092 = vmatpush1.msra.mxu0 0.0
    %1093 = vmatprep.subr.mxu0 0.0
    %1094 = vmatpush1.msra.mxu0 0.0
    %1095 = vmatprep.subr.mxu0 0.0
    %1096 = vmatpush1.msra.mxu0 0.0
    %1097 = vmatprep.subr.mxu0 0.0
    %1098 = vmatpush1.msra.mxu0 0.0
    %1099 = vmatprep.subr.mxu0 0.0
    %1100 = vmatpush1.msra.mxu0 0.0
    %1101 = vmatprep.subr.mxu0 0.0
    %1102 = vmatpush1.msra.mxu0 0.0
    %1103 = vmatprep.subr.mxu0 0.0
    %1104 = vmatpush1.msra.mxu0 0.0
    %1105 = vmatprep.subr.mxu0 0.0
    %1106 = vmatpush1.msra.mxu0 0.0
    %1107 = vmatprep.subr.mxu0 0.0
    %1108 = vmatpush1.msra.mxu0 0.0
    %1109 = vmatprep.subr.mxu0 0.0
    %1110 = vmatpush1.msra.mxu0 0.0
    %1111 = vmatprep.subr.mxu0 0.0
    %1112 = vmatpush1.msra.mxu0 0.0
    %1113 = vmatprep.subr.mxu0 0.0
    %1114 = vmatpush1.msra.mxu0 0.0
    %1115 = vmatprep.subr.mxu0 0.0
    %1116 = vmatpush1.msra.mxu0 0.0
    %1117 = vmatprep.subr.mxu0 0.0
    %1118 = vmatpush1.msra.mxu0 0.0
    %1119 = vmatprep.subr.mxu0 0.0
    %1120 = vmatpush1.msra.mxu0 0.0
    %1121 = vmatprep.subr.mxu0 0.0
    %1122 = vmatpush1.msra.mxu0 0.0
    %1123 = vmatprep.subr.mxu0 0.0
    %1124 = vmatpush1.msra.mxu0 0.0
    %1125 = vmatprep.subr.mxu0 0.0
    %1126 = vmatpush1.msra.mxu0 0.0
    %1127 = vmatprep.mubr.f32.mxu0 0.0
    %1128 = vmatmul.mubr.f32.gmra.mrb[0].mxu0 %v1061
    %v1129 = vpop.f32.mrb[0].mxu0
    %v1130 = vadd.f32 %v1059, %v1129
    %v1131 = vpop.f32.mrb[0].mxu0
    %1132 = vdwg.mxu0
    %vm1133 = vcmask 64512
    %1134 = vst.msk [vmem:[#allocation8] sm:$0xff] %vm1133, %v1130
    // Predicated region
    $region26: #{lstm_tagger.1} parent=1 // pred_check
      _
    $region27: #{lstm_tagger.1} parent=1 // pred_check_branch
      %1136 = sbr.rel (0) target = $region29
    $region28: #{lstm_tagger.1} parent=1 // pred_region
      %s1138 = ssub.s32 128, 128
      %1139 = vsyncadd [#allocation5], %s1138
      %s1141 = sshll.u32 [#allocation8], 4
      %s1142 = int_to_ptr.vmem [resolvable:$true] %s1141
      %1144 = dma.vmem_to_hbm [thread:$0]  %s1142, 128, %s4, [#allocation5]
    $region29: #{lstm_tagger.1} parent=1 // pred_fallthru
      _
    // Predicated region
    $region30: #{lstm_tagger.1} parent=1 // pred_check
      _
    $region31: #{lstm_tagger.1} parent=1 // pred_check_branch
      %1146 = sbr.rel (0) target = $region33
    $region32: #{lstm_tagger.1} parent=1 // pred_region
      %1147 = dma.done [#allocation5], 128
    $region33: #{lstm_tagger.1} parent=1 // pred_fallthru
      _
    %1148 = vsyncpa [#allocation4], 1
    %1149 = vsyncpa [#allocation7], 1
    %1150 = vsyncpa [#allocation5], 1

</llo_original>
